<compile_context>
chip_gen: v7x
topology: tpu7x:2x2x1
jax: 0.10.0
libtpu: 0.0.40
codegen_flags: <defaults>
</compile_context>

<pallas_src>
import jax
import jax.numpy as jnp
from jax.experimental import pallas as pl
from jax.experimental.pallas import tpu as pltpu


def _shift_down(x, axis):
    """result[..., i, ...] = x[..., max(i - 1, 0), ...] (edge replicate along `axis`).

    Built from a static slice + concat so it lowers on Mosaic (lane/sublane rotate +
    select) and also evaluates cleanly under interpret mode.  Because the edge is
    replicated, the index-0 difference is exactly zero -- no wrap term, no mask.
    """
    if x.shape[axis] == 1:
        return x
    lead = jax.lax.slice_in_dim(x, 0, 1, axis=axis)
    body = jax.lax.slice_in_dim(x, 0, x.shape[axis] - 1, axis=axis)
    return jax.lax.concatenate([lead, body], dimension=axis)


def _tv_kernel(x_ref, out_h_ref, out_v_ref, carry_ref):
    """One (batch, H-tile) block per grid step; accumulates per-batch lane partials."""
    h = pl.program_id(1)

    x = x_ref[...].astype(jnp.float32)          # (1, C, Ht, W); f32 for PyTorch parity
    ht = x.shape[2]

    @pl.when(h == 0)
    def _():
        out_h_ref[...] = jnp.zeros_like(out_h_ref)
        out_v_ref[...] = jnp.zeros_like(out_v_ref)
        carry_ref[...] = x[:, :, 0:1, :]        # seam diff for the first tile is zero

    # ---- horizontal TV: reduced and stored BEFORE the vertical path is built, so only
    #      ~2 full-size temporaries are ever live at once.  Column-0 diff is zero.
    dh = jnp.abs(x - _shift_down(x, axis=3))
    out_h_ref[...] += jnp.sum(dh, axis=(0, 1, 2), keepdims=True)

    # ---- vertical TV: unmasked in-tile diff (row-0 diff is zero) plus a single-row
    #      seam correction against the carried last row of the previous H-tile.
    dv = jnp.abs(x - _shift_down(x, axis=2))
    first = x[:, :, 0:1, :]
    seam = jnp.abs(first - carry_ref[...])      # (1, C, 1, W); zero when h == 0
    carry_ref[...] = x[:, :, ht - 1:ht, :]      # carry this tile's last row forward
    out_v_ref[...] += (jnp.sum(dv, axis=(0, 1, 2), keepdims=True)
                       + jnp.sum(seam, axis=(0, 1, 2), keepdims=True))


def _sublane_align(dtype):
    """Sublane packing granularity: f32 vreg is (8,128), bf16 (16,128), int8/fp8 (32,128)."""
    return {4: 8, 2: 16, 1: 32}.get(jnp.dtype(dtype).itemsize, 8)


def _tile_budget_bytes():
    """(per-block f32-temporary budget, scoped-VMEM limit), generation aware.

    v7x has only 64 MiB physical VMEM per TensorCore -> conservative defaults; v5e/v6e
    (128 MiB) get larger blocks and a higher limit (fewer, longer DMA steps).
    """
    budget, limit = 8 << 20, 48 << 20
    try:
        if pltpu.get_tpu_info().vmem_capacity_bytes >= (96 << 20):
            budget, limit = 16 << 20, 96 << 20
    except Exception:
        pass  # non-TPU / interpret backends: keep the v7x-safe defaults
    return budget, limit


def _choose_h_tile(C, H, W, dtype, budget_bytes):
    """Largest H-tile that divides H, is sublane-aligned for `dtype`, and keeps the
    ~2 live full-block f32 temporaries within budget_bytes."""
    align = _sublane_align(dtype)
    rows = budget_bytes // max(1, 2 * C * W * 4)
    if rows >= H:
        return H
    t = (rows // align) * align
    while t >= align:
        if H % t == 0:
            return t
        t -= align
    # TODO(synk): H has no sublane-aligned divisor under the budget; whole-image
    # fallback (may exceed the VMEM limit for very large images).
    return H


def tv_loss(pred, target=None, *, h_tile=None):
    """Pallas TV loss.  `pred` is (N, C, H, W); `target` is ignored (PyTorch parity)."""
    assert pred.ndim == 4
    del target
    N, C, H, W = pred.shape

    budget, vmem_limit = _tile_budget_bytes()
    if h_tile is None:
        h_tile = _choose_h_tile(C, H, W, pred.dtype, budget)
    assert H % h_tile == 0
    assert h_tile == H or h_tile % _sublane_align(pred.dtype) == 0
    n_h = H // h_tile

    # Means of the two difference tensors.  NOTE: H == 1 or W == 1 hits a divide-by-zero
    # here (same degenerate-shape hazard as the PyTorch module's empty-tensor mean).
    inv_h = 1.0 / float(N * C * H * (W - 1))
    inv_v = 1.0 / float(N * C * (H - 1) * W)

    itemsize = pred.dtype.itemsize
    cost = pl.CostEstimate(
        flops=6 * N * C * H * W,
        transcendentals=0,
        bytes_accessed=N * C * H * W * itemsize + 2 * N * W * 4,
    )

    part_h, part_v = pl.pallas_call(
        _tv_kernel,
        out_shape=(
            jax.ShapeDtypeStruct((N, 1, 1, W), jnp.float32),
            jax.ShapeDtypeStruct((N, 1, 1, W), jnp.float32),
        ),
        grid_spec=pltpu.PrefetchScalarGridSpec(
            num_scalar_prefetch=0,
            grid=(N, n_h),
            in_specs=[
                pl.BlockSpec((1, C, h_tile, W), lambda n, h: (n, 0, h, 0)),
            ],
            out_specs=[
                # Resident accumulators: same output block across the whole H-tile axis,
                # so there is no per-step output writeback.
                pl.BlockSpec((1, 1, 1, W), lambda n, h: (n, 0, 0, 0)),
                pl.BlockSpec((1, 1, 1, W), lambda n, h: (n, 0, 0, 0)),
            ],
            scratch_shapes=[
                pltpu.VMEM((1, C, 1, W), jnp.float32),  # carried last row of prev H-tile
            ],
        ),
        compiler_params=pltpu.CompilerParams(
            # Batch axis shards across TensorCores (megacore); the H-tile axis must stay
            # sequential because of the carried seam row and the resident accumulators.
            dimension_semantics=("parallel", "arbitrary"),
            vmem_limit_bytes=vmem_limit,
        ),
        cost_estimate=cost,
    )(pred)

    # Single cheap cross-lane reduce + the two means happen once, here, in f32.
    return jnp.sum(part_h) * inv_h + jnp.sum(part_v) * inv_v


def tv_loss_ref(pred):
    """Pure-JAX reference (mirrors the PyTorch module exactly)."""
    p = pred.astype(jnp.float32)
    return (jnp.mean(jnp.abs(p[:, :, :, :-1] - p[:, :, :, 1:]))
            + jnp.mean(jnp.abs(p[:, :, :-1, :] - p[:, :, 1:, :])))


if __name__ == "__main__":
    key = jax.random.PRNGKey(0)
    k1, k2 = jax.random.split(key)
    # Small NCHW shapes consistent with the module's 4-D input assumption.
    pred = jax.random.normal(k1, (2, 4, 16, 16), dtype=jnp.float32)
    target = jax.random.normal(k2, (2, 4, 16, 16), dtype=jnp.float32)  # unused, as in PyTorch

    ref = tv_loss_ref(pred)

    # Multi-tile path: exercises the carried vertical seam between H-tiles.
    loss_tiled = jax.block_until_ready(tv_loss(pred, target, h_tile=8))
    assert jnp.allclose(loss_tiled, ref, rtol=1e-5, atol=1e-5), (loss_tiled, ref)

    # Auto-tiled path (single H-tile at this small shape).
    loss_auto = jax.block_until_ready(tv_loss(pred, target))
    assert jnp.allclose(loss_auto, ref, rtol=1e-5, atol=1e-5), (loss_auto, ref)

    print("KERNEL_OK")
</pallas_src>

<mosaic_0001>
module attributes {stable_mosaic.version = 11 : i64} {
  func.func @_tv_kernel(%arg0: i32, %arg1: i32, %arg2: memref<1x4x8x16xf32, #tpu.memory_space<vmem>>, %arg3: memref<1x1x1x16xf32, #tpu.memory_space<vmem>>, %arg4: memref<1x1x1x16xf32, #tpu.memory_space<vmem>>, %arg5: memref<1x4x1x16xf32, #tpu.memory_space<vmem>>) attributes {dimension_semantics = [#tpu.dimension_semantics<parallel>, #tpu.dimension_semantics<arbitrary>], iteration_bounds = array<i64: 2, 2>, scalar_prefetch = 0 : i64, scratch_operands = 1 : i64, tpu.core_type = #tpu.core_type<tc>, window_params = [{transform_indices = @transform_0, window_bounds = array<i64: 1, 4, 8, 16>}, {transform_indices = @transform_1, window_bounds = array<i64: 1, 1, 1, 16>}, {transform_indices = @transform_2, window_bounds = array<i64: 1, 1, 1, 16>}]} {
    %c0 = arith.constant 0 : index
    %c0_0 = arith.constant 0 : index
    %c0_1 = arith.constant 0 : index
    %c0_2 = arith.constant 0 : index
    %0 = vector.load %arg2[%c0, %c0_0, %c0_1, %c0_2] : memref<1x4x8x16xf32, #tpu.memory_space<vmem>>, vector<1x4x8x16xf32>
    %c0_i32 = arith.constant 0 : i32
    %1 = arith.cmpi eq, %arg1, %c0_i32 : i32
    %2 = arith.extui %1 : i1 to i32
    %c0_i32_3 = arith.constant 0 : i32
    %3 = arith.cmpi ne, %2, %c0_i32_3 : i32
    scf.if %3 {
      %cst_30 = arith.constant 0.000000e+00 : f32
      %33 = vector.broadcast %cst_30 : f32 to vector<1x1x1x16xf32>
      %c0_31 = arith.constant 0 : index
      %c0_32 = arith.constant 0 : index
      %c0_33 = arith.constant 0 : index
      %c0_34 = arith.constant 0 : index
      %34 = vector.load %arg3[%c0_31, %c0_32, %c0_33, %c0_34] : memref<1x1x1x16xf32, #tpu.memory_space<vmem>>, vector<1x1x1x16xf32>
      tpu.vector_store %arg3[%c0_31, %c0_32, %c0_33, %c0_34], %33 {strides = array<i32>} : memref<1x1x1x16xf32, #tpu.memory_space<vmem>>, vector<1x1x1x16xf32>,
      %cst_35 = arith.constant 0.000000e+00 : f32
      %35 = vector.broadcast %cst_35 : f32 to vector<1x1x1x16xf32>
      %c0_36 = arith.constant 0 : index
      %c0_37 = arith.constant 0 : index
      %c0_38 = arith.constant 0 : index
      %c0_39 = arith.constant 0 : index
      %36 = vector.load %arg4[%c0_36, %c0_37, %c0_38, %c0_39] : memref<1x1x1x16xf32, #tpu.memory_space<vmem>>, vector<1x1x1x16xf32>
      tpu.vector_store %arg4[%c0_36, %c0_37, %c0_38, %c0_39], %35 {strides = array<i32>} : memref<1x1x1x16xf32, #tpu.memory_space<vmem>>, vector<1x1x1x16xf32>,
      %37 = vector.extract_strided_slice %0 {offsets = [0, 0, 0, 0], sizes = [1, 4, 1, 16], strides = [1, 1, 1, 1]} : vector<1x4x8x16xf32> to vector<1x4x1x16xf32>
      %c0_40 = arith.constant 0 : index
      %c0_41 = arith.constant 0 : index
      %c0_42 = arith.constant 0 : index
      %c0_43 = arith.constant 0 : index
      %38 = vector.load %arg5[%c0_40, %c0_41, %c0_42, %c0_43] : memref<1x4x1x16xf32, #tpu.memory_space<vmem>>, vector<1x4x1x16xf32>
      tpu.vector_store %arg5[%c0_40, %c0_41, %c0_42, %c0_43], %37 {strides = array<i32>} : memref<1x4x1x16xf32, #tpu.memory_space<vmem>>, vector<1x4x1x16xf32>,
    } else {
    }
    %4 = vector.extract_strided_slice %0 {offsets = [0, 0, 0, 0], sizes = [1, 4, 8, 1], strides = [1, 1, 1, 1]} : vector<1x4x8x16xf32> to vector<1x4x8x1xf32>
    %5 = vector.extract_strided_slice %0 {offsets = [0, 0, 0, 0], sizes = [1, 4, 8, 15], strides = [1, 1, 1, 1]} : vector<1x4x8x16xf32> to vector<1x4x8x15xf32>
    %6 = tpu.concatenate %4, %5 in 3 : vector<1x4x8x1xf32>, vector<1x4x8x15xf32> -> vector<1x4x8x16xf32>
    %7 = arith.subf %0, %6 : vector<1x4x8x16xf32>
    %8 = math.absf %7 : vector<1x4x8x16xf32>
    %c0_4 = arith.constant 0 : index
    %c0_5 = arith.constant 0 : index
    %c0_6 = arith.constant 0 : index
    %c0_7 = arith.constant 0 : index
    %9 = vector.load %arg3[%c0_4, %c0_5, %c0_6, %c0_7] : memref<1x1x1x16xf32, #tpu.memory_space<vmem>>, vector<1x1x1x16xf32>
    %cst = arith.constant dense<0.000000e+00> : vector<16xf32>
    %10 = vector.multi_reduction <add>, %8, %cst [0, 1, 2] : vector<1x4x8x16xf32> to vector<16xf32>
    %11 = vector.shape_cast %10 : vector<16xf32> to vector<1x1x1x16xf32>
    %12 = arith.addf %9, %11 : vector<1x1x1x16xf32>
    %c0_8 = arith.constant 0 : index
    %c0_9 = arith.constant 0 : index
    %c0_10 = arith.constant 0 : index
    %c0_11 = arith.constant 0 : index
    %13 = vector.load %arg3[%c0_8, %c0_9, %c0_10, %c0_11] : memref<1x1x1x16xf32, #tpu.memory_space<vmem>>, vector<1x1x1x16xf32>
    tpu.vector_store %arg3[%c0_8, %c0_9, %c0_10, %c0_11], %12 {strides = array<i32>} : memref<1x1x1x16xf32, #tpu.memory_space<vmem>>, vector<1x1x1x16xf32>,
    %14 = vector.extract_strided_slice %0 {offsets = [0, 0, 0, 0], sizes = [1, 4, 1, 16], strides = [1, 1, 1, 1]} : vector<1x4x8x16xf32> to vector<1x4x1x16xf32>
    %15 = vector.extract_strided_slice %0 {offsets = [0, 0, 0, 0], sizes = [1, 4, 7, 16], strides = [1, 1, 1, 1]} : vector<1x4x8x16xf32> to vector<1x4x7x16xf32>
    %16 = tpu.concatenate %14, %15 in 2 : vector<1x4x1x16xf32>, vector<1x4x7x16xf32> -> vector<1x4x8x16xf32>
    %17 = arith.subf %0, %16 : vector<1x4x8x16xf32>
    %18 = math.absf %17 : vector<1x4x8x16xf32>
    %19 = vector.extract_strided_slice %0 {offsets = [0, 0, 0, 0], sizes = [1, 4, 1, 16], strides = [1, 1, 1, 1]} : vector<1x4x8x16xf32> to vector<1x4x1x16xf32>
    %c0_12 = arith.constant 0 : index
    %c0_13 = arith.constant 0 : index
    %c0_14 = arith.constant 0 : index
    %c0_15 = arith.constant 0 : index
    %20 = vector.load %arg5[%c0_12, %c0_13, %c0_14, %c0_15] : memref<1x4x1x16xf32, #tpu.memory_space<vmem>>, vector<1x4x1x16xf32>
    %21 = arith.subf %19, %20 : vector<1x4x1x16xf32>
    %22 = math.absf %21 : vector<1x4x1x16xf32>
    %23 = vector.extract_strided_slice %0 {offsets = [0, 0, 7, 0], sizes = [1, 4, 1, 16], strides = [1, 1, 1, 1]} : vector<1x4x8x16xf32> to vector<1x4x1x16xf32>
    %c0_16 = arith.constant 0 : index
    %c0_17 = arith.constant 0 : index
    %c0_18 = arith.constant 0 : index
    %c0_19 = arith.constant 0 : index
    %24 = vector.load %arg5[%c0_16, %c0_17, %c0_18, %c0_19] : memref<1x4x1x16xf32, #tpu.memory_space<vmem>>, vector<1x4x1x16xf32>
    tpu.vector_store %arg5[%c0_16, %c0_17, %c0_18, %c0_19], %23 {strides = array<i32>} : memref<1x4x1x16xf32, #tpu.memory_space<vmem>>, vector<1x4x1x16xf32>,
    %c0_20 = arith.constant 0 : index
    %c0_21 = arith.constant 0 : index
    %c0_22 = arith.constant 0 : index
    %c0_23 = arith.constant 0 : index
    %25 = vector.load %arg4[%c0_20, %c0_21, %c0_22, %c0_23] : memref<1x1x1x16xf32, #tpu.memory_space<vmem>>, vector<1x1x1x16xf32>
    %cst_24 = arith.constant dense<0.000000e+00> : vector<16xf32>
    %26 = vector.multi_reduction <add>, %18, %cst_24 [0, 1, 2] : vector<1x4x8x16xf32> to vector<16xf32>
    %27 = vector.shape_cast %26 : vector<16xf32> to vector<1x1x1x16xf32>
    %cst_25 = arith.constant dense<0.000000e+00> : vector<16xf32>
    %28 = vector.multi_reduction <add>, %22, %cst_25 [0, 1, 2] : vector<1x4x1x16xf32> to vector<16xf32>
    %29 = vector.shape_cast %28 : vector<16xf32> to vector<1x1x1x16xf32>
    %30 = arith.addf %27, %29 : vector<1x1x1x16xf32>
    %31 = arith.addf %25, %30 : vector<1x1x1x16xf32>
    %c0_26 = arith.constant 0 : index
    %c0_27 = arith.constant 0 : index
    %c0_28 = arith.constant 0 : index
    %c0_29 = arith.constant 0 : index
    %32 = vector.load %arg4[%c0_26, %c0_27, %c0_28, %c0_29] : memref<1x1x1x16xf32, #tpu.memory_space<vmem>>, vector<1x1x1x16xf32>
    tpu.vector_store %arg4[%c0_26, %c0_27, %c0_28, %c0_29], %31 {strides = array<i32>} : memref<1x1x1x16xf32, #tpu.memory_space<vmem>>, vector<1x1x1x16xf32>,
    return
  }
  func.func @transform_0(%arg0: i32, %arg1: i32) -> (i32, i32, i32, i32) {
    %c0_i32 = arith.constant 0 : i32
    %c0_i32_0 = arith.constant 0 : i32
    %c0_i32_1 = arith.constant 0 : i32
    return %arg0, %c0_i32, %arg1, %c0_i32_0 : i32, i32, i32, i32
  }
  func.func @transform_1(%arg0: i32, %arg1: i32) -> (i32, i32, i32, i32) {
    %c0_i32 = arith.constant 0 : i32
    %c0_i32_0 = arith.constant 0 : i32
    %c0_i32_1 = arith.constant 0 : i32
    %c0_i32_2 = arith.constant 0 : i32
    return %arg0, %c0_i32, %c0_i32_0, %c0_i32_1 : i32, i32, i32, i32
  }
  func.func @transform_2(%arg0: i32, %arg1: i32) -> (i32, i32, i32, i32) {
    %c0_i32 = arith.constant 0 : i32
    %c0_i32_0 = arith.constant 0 : i32
    %c0_i32_1 = arith.constant 0 : i32
    %c0_i32_2 = arith.constant 0 : i32
    return %arg0, %c0_i32, %c0_i32_0, %c0_i32_1 : i32, i32, i32, i32
  }
}

</mosaic_0001>

<llo_original>
// kernel: tpu_custom_call.1
$region0: #{tpu_custom_call.1}
  #allocation0 [shape = 'u32[]', space=smem, size = 0x4, offset = 0x4, fixed_abs, tag = 'smem constant byte address 0x4 - core index']
  #allocation1 [shape = 'u32[144,128]{1,0:T(1,128)}', space=vmem, size = 0x12000, scoped, tag = 'internal scratch']
  #allocation2 [shape = 'f32[1,4,1,16]{3,2,1,0:T(1,128)}', space=vmem, size = 0x800, scoped, tag = 'scratch operand']
  %s0 = inlined_call_operand.hbm [shape: f32[2,4,16,16], index: 0, kind: input, shape index: {}]
  %s1 = inlined_call_operand.hbm [shape: f32[2,1,1,16], index: 1, kind: output, shape index: {0}]
  %s2 = inlined_call_operand.hbm [shape: f32[2,1,1,16], index: 2, kind: output, shape index: {1}]
  %3 = xla_tuple %s1, %s2
  %s4 = sld [smem:[#allocation0]]
  $region53: #{tpu_custom_call.1} parent=0
    _
  %s6 = ssub.s32 1, %s4
  %s7 = scalar_select 0, %s6, %s4
  $region1: #{tpu_custom_call.1} parent=0
    #allocation3 [shape = 'u8[32768]{0}', space=vmem, size = 0x8000, scoped, tag = 'input window, operand 0']
    #allocation4 [shape = 's32[2]{0}', space=sflag, size = 0x8, scoped, tag = 'scoped memory for tpu_custom_call.1']
    #allocation5 [shape = 's32[2]{0}', space=sflag, size = 0x8, scoped, tag = 'scoped memory for tpu_custom_call.1']
    #allocation6 [shape = 'u8[1024]{0}', space=vmem, size = 0x400, scoped, tag = 'output window, operand 0']
    #allocation7 [shape = 'u8[1024]{0}', space=vmem, size = 0x400, scoped, tag = 'output window, operand 1']
    #allocation8 [shape = 's32[2]{0}', space=sflag, size = 0x8, scoped, tag = 'scoped memory for tpu_custom_call.1']
    %8 = vsyncpa [#allocation4], 0
    %s9 = scalar_lea.sflag [#allocation4], 1
    %10 = vsyncpa %s9, 0
    %11 = vsyncpa [#allocation5], 0
    %s12 = scalar_lea.sflag [#allocation5], 1
    %13 = vsyncpa %s12, 0
    %14 = vsyncpa [#allocation8], 0
    %s15 = scalar_lea.sflag [#allocation8], 1
    %16 = vsyncpa %s15, 0
    loop: start=0, step=1, limit=6
    $region2: #{tpu_custom_call.1} parent=1 // loop_pre_header
      _
    $region3: #{tpu_custom_call.1} parent=1 // loop_header
      %s18 = sphi 0, %s22
      %p19 = scmp.ge.s32.totalorder %s18, 6
      %s25 = sphi 0, %s37
      %s26 = sphi 0, %s33
      %s27 = sphi 0, %s25
      %s28 = sphi 0, %s26
      %s29 = sphi 0, %s27
      %s30 = sphi 0, %s28
      %s42 = sphi 0, %s44
      %s45 = sphi 0, %s42
      %s46 = sphi 0, %s45
      %s62 = sphi 0, %s46
      %s68 = sphi 0, %s70
      %s71 = sphi 0, %s68
      %s72 = sphi 0, %s71
      %s88 = sphi 0, %s72
      %s94 = sphi 0, %s96
      %s97 = sphi 0, %s94
      %s98 = sphi 0, %s97
      %s114 = sphi 0, %s98
    $region4: #{tpu_custom_call.1} parent=1 // loop_header_branch
      %21 = sbr.rel (%p19) target = $region8
    $region5: #{tpu_custom_call.1} parent=1 // loop_body
      %s23 = ssub.s32 %s18, 1
      %s24 = ssub.s32 %s18, 2
      %s31 = sadd.s32 1, %s26
      %p32 = scmp.ge.s32.totalorder %s31, 2
      %s33 = scalar_select %p32, 0, %s31
      %s34 = sadd.s32 1, %s25
      %s35 = scalar_select %p32, %s34, %s25
      %p36 = scmp.ge.s32.totalorder %s35, 2
      %s37 = scalar_select %p36, 0, %s35
      %s38 = ssub.s32 %s25, %s37
      %s39 = ssub.s32 %s26, %s33
      %s40 = sor.u32 %s38, %s39
      %p41 = scmp.eq.s32.totalorder %s40, 0
      %s43 = sadd.s32 %s42, 1
      %s44 = scalar_select %p41, %s42, %s43
      %p47 = pneg %p41
      %p48 = scmp.eq.s32.totalorder %s18, 3
      %p49 = por %p47, %p48
      %p50 = scmp.ne.s32.totalorder %s42, %s45
      %p51 = scmp.eq.s32.totalorder %s18, 0
      %p52 = por %p50, %p51
      %p53 = scmp.ne.s32.totalorder %s42, %s45
      %p54 = scmp.eq.s32.totalorder %s23, 3
      %p55 = por %p53, %p54
      %p56 = scmp.ne.s32.totalorder %s45, %s46
      %p57 = scmp.eq.s32.totalorder %s23, 0
      %p58 = por %p56, %p57
      %p59 = scmp.ne.s32.totalorder %s45, %s46
      %p60 = scmp.eq.s32.totalorder %s24, 3
      %p61 = por %p59, %p60
      %p63 = scmp.ne.s32.totalorder %s46, %s62
      %p64 = scmp.eq.s32.totalorder %s24, 0
      %p65 = por %p63, %p64
      %s66 = ssub.s32 %s25, %s37
      %p67 = scmp.eq.s32.totalorder %s66, 0
      %s69 = sadd.s32 %s68, 1
      %s70 = scalar_select %p67, %s68, %s69
      %p73 = pneg %p67
      %p74 = scmp.eq.s32.totalorder %s18, 3
      %p75 = por %p73, %p74
      %p76 = scmp.ne.s32.totalorder %s68, %s71
      %p77 = scmp.eq.s32.totalorder %s18, 0
      %p78 = por %p76, %p77
      %p79 = scmp.ne.s32.totalorder %s68, %s71
      %p80 = scmp.eq.s32.totalorder %s23, 3
      %p81 = por %p79, %p80
      %p82 = scmp.ne.s32.totalorder %s71, %s72
      %p83 = scmp.eq.s32.totalorder %s23, 0
      %p84 = por %p82, %p83
      %p85 = scmp.ne.s32.totalorder %s71, %s72
      %p86 = scmp.eq.s32.totalorder %s24, 3
      %p87 = por %p85, %p86
      %p89 = scmp.ne.s32.totalorder %s72, %s88
      %p90 = scmp.eq.s32.totalorder %s24, 0
      %p91 = por %p89, %p90
      %s92 = ssub.s32 %s25, %s37
      %p93 = scmp.eq.s32.totalorder %s92, 0
      %s95 = sadd.s32 %s94, 1
      %s96 = scalar_select %p93, %s94, %s95
      %p99 = pneg %p93
      %p100 = scmp.eq.s32.totalorder %s18, 3
      %p101 = por %p99, %p100
      %p102 = scmp.ne.s32.totalorder %s94, %s97
      %p103 = scmp.eq.s32.totalorder %s18, 0
      %p104 = por %p102, %p103
      %p105 = scmp.ne.s32.totalorder %s94, %s97
      %p106 = scmp.eq.s32.totalorder %s23, 3
      %p107 = por %p105, %p106
      %p108 = scmp.ne.s32.totalorder %s97, %s98
      %p109 = scmp.eq.s32.totalorder %s23, 0
      %p110 = por %p108, %p109
      %p111 = scmp.ne.s32.totalorder %s97, %s98
      %p112 = scmp.eq.s32.totalorder %s24, 3
      %p113 = por %p111, %p112
      %p115 = scmp.ne.s32.totalorder %s98, %s114
      %p116 = scmp.eq.s32.totalorder %s24, 0
      %p117 = por %p115, %p116
      %p118 = scmp.le.s32.totalorder 1, %s18
      %p119 = scmp.lt.s32.totalorder %s18, 5
      %p120 = pnand %p118, %p119
      %p121 = pneg %p120
      // Predicated region
      $region9: #{tpu_custom_call.1} parent=5 // pred_check
        _
      $region10: #{tpu_custom_call.1} parent=5 // pred_check_branch
        %123 = sbr.rel (%p120) target = $region12
      $region11: #{tpu_custom_call.1} parent=5 // pred_region
        %s124 = ssub.s32 %s18, 1
      $region12: #{tpu_custom_call.1} parent=5 // pred_fallthru
        _
      %p125 = scmp.lt.s32.totalorder %s18, 4
      // Predicated region
      $region13: #{tpu_custom_call.1} parent=5 // pred_check
        %p126 = pneg %p125
      $region14: #{tpu_custom_call.1} parent=5 // pred_check_branch
        %128 = sbr.rel (%p126) target = $region16
      $region15: #{tpu_custom_call.1} parent=5 // pred_region
        // Predicated region
        $region17: #{tpu_custom_call.1} parent=15 // pred_check
          %p129 = pneg %p52
        $region18: #{tpu_custom_call.1} parent=15 // pred_check_branch
          %131 = sbr.rel (%p129) target = $region20
        $region19: #{tpu_custom_call.1} parent=15 // pred_region
          %s132 = sand.u32 %s42, 1
          %s133 = scalar_lea.sflag [#allocation4], %s132
          %s134 = sand.u32 %s42, 1
          %s135 = smul.addr %s134, 32
          %s136 = scalar_lea.vmem [#allocation3], %s135
          %s138 = ssub.s32 512, 512
          %139 = vsyncadd %s133, %s138
          %s140 = smul.addr %s25, 8
          %s141 = sadd.s32 %s26, %s140
          %s142 = smul.addr %s141, 128
          %s143 = scalar_lea.hbm %s0, %s142
          %s144 = sshll.u32 %s136, 4
          %s145 = int_to_ptr.vmem [resolvable:$true] %s144
          %150 = dma.hbm_to_vmem [thread:$0]  %s143, 512, %s145, %s133, 256, 128, 8
        $region20: #{tpu_custom_call.1} parent=15 // pred_fallthru
          _
      $region16: #{tpu_custom_call.1} parent=5 // pred_fallthru
        _
      %p151 = scmp.le.s32.totalorder 1, %s18
      %p152 = scmp.lt.s32.totalorder %s18, 5
      %p153 = pnand %p151, %p152
      %p154 = pneg %p153
      // Predicated region
      $region21: #{tpu_custom_call.1} parent=5 // pred_check
        _
      $region22: #{tpu_custom_call.1} parent=5 // pred_check_branch
        %156 = sbr.rel (%p153) target = $region24
      $region23: #{tpu_custom_call.1} parent=5 // pred_region
        %s157 = ssub.s32 %s18, 1
        %s158 = sand.u32 %s45, 1
        %s159 = scalar_lea.sflag [#allocation4], %s158
        %s160 = sand.u32 %s45, 1
        %s161 = smul.addr %s160, 32
        %s162 = scalar_lea.vmem [#allocation3], %s161
        // Predicated region
        $region25: #{tpu_custom_call.1} parent=23 // pred_check
          %p163 = pneg %p58
        $region26: #{tpu_custom_call.1} parent=23 // pred_check_branch
          %165 = sbr.rel (%p163) target = $region28
        $region27: #{tpu_custom_call.1} parent=23 // pred_region
          %166 = dma.done %s159, 512
        $region28: #{tpu_custom_call.1} parent=23 // pred_fallthru
          _
        %s167 = sand.u32 %s45, 1
        %s168 = scalar_lea.sflag [#allocation4], %s167
        %s169 = sand.u32 %s45, 1
        %s170 = smul.addr %s169, 32
        %s171 = scalar_lea.vmem [#allocation3], %s170
        %p172 = pneg %p58
        %p173 = pneg %p55
        %p174 = pneg %p84
        %p175 = pneg %p81
        %s176 = sand.u32 %s71, 1
        %s177 = scalar_lea.sflag [#allocation5], %s176
        %s178 = sand.u32 %s71, 1
        %s179 = scalar_lea.vmem [#allocation6], %s178
        %p180 = pneg %p110
        %p181 = pneg %p107
        %s182 = sand.u32 %s97, 1
        %s183 = scalar_lea.sflag [#allocation8], %s182
        %s184 = sand.u32 %s97, 1
        %s185 = scalar_lea.vmem [#allocation7], %s184
        %v186 = vld [vmem:[%s162] sm:$0xff]
        %v187 = vld [vmem:[%s162 + $0x8] sm:$0xff]
        %v188 = vld [vmem:[%s162 + $0x10] sm:$0xff]
        %v189 = vld [vmem:[%s162 + $0x18] sm:$0xff]
        %p190 = scmp.eq.s32.totalorder %s28, 0
        // Predicated region
        $region29: #{tpu_custom_call.1} parent=23 // pred_check
          %p191 = pneg %p190
        $region30: #{tpu_custom_call.1} parent=23 // pred_check_branch
          %193 = sbr.rel (%p191) target = $region32
        $region31: #{tpu_custom_call.1} parent=23 // pred_region
          %vm194 = vcmask 122880
          %195 = vst.msk [vmem:[%s179] sm:$0x1] %vm194, 0.0
          %196 = vst.msk [vmem:[%s185] sm:$0x1] %vm194, 0.0
          %197 = vst.msk [vmem:[#allocation2] sm:$0x1] %vm194, %v186
          %198 = vst.msk [vmem:[#allocation2 + $0x1] sm:$0x1] %vm194, %v187
          %199 = vst.msk [vmem:[#allocation2 + $0x2] sm:$0x1] %vm194, %v188
          %200 = vst.msk [vmem:[#allocation2 + $0x3] sm:$0x1] %vm194, %v189
        $region32: #{tpu_custom_call.1} parent=23 // pred_fallthru
          _
        %205 = vrot.lane.b32.xlu0 %v186, 1
        %v206 = vpop.permute.xlu0 %205
        %207 = vrot.lane.b32.xlu0 %v187, 1
        %v208 = vpop.permute.xlu0 %207
        %209 = vrot.lane.b32.xlu0 %v188, 1
        %v210 = vpop.permute.xlu0 %209
        %211 = vrot.lane.b32.xlu0 %v189, 1
        %v212 = vpop.permute.xlu0 %211
        %vm217 = vcmask 7168
        %v218 = vsel %vm217, %v186, %v206
        %v219 = vsel %vm217, %v187, %v208
        %v220 = vsel %vm217, %v188, %v210
        %v221 = vsel %vm217, %v189, %v212
        %v222 = vsub.f32 %v186, %v218
        %v223 = vsub.f32 %v187, %v219
        %v224 = vsub.f32 %v188, %v220
        %v225 = vsub.f32 %v189, %v221
        %v226 = vand.u32 2147483647, %v222
        %v227 = vand.u32 2147483647, %v223
        %v228 = vand.u32 2147483647, %v224
        %v229 = vand.u32 2147483647, %v225
        %v230 = vld [vmem:[%s179] sm:$0x1]
        %vm231 = vcmask 130048
        %v232 = vsel %vm231, %v226, 0.0
        %v233 = vsel %vm231, %v227, 0.0
        %v234 = vadd.f32 %v232, %v233
        %v235 = vsel %vm231, %v228, 0.0
        %v236 = vadd.f32 %v234, %v235
        %v237 = vsel %vm231, %v229, 0.0
        %v238 = vadd.f32 %v236, %v237
        %v239 = vrot.slane %v238, 4
        %v240 = vadd.f32 %v238, %v239
        %v241 = vrot.slane %v240, 2
        %v242 = vadd.f32 %v240, %v241
        %v243 = vrot.slane %v242, 1
        %v244 = vadd.f32 %v242, %v243
        %v245 = vadd.f32 %v230, %v244
        %vm246 = vcmask 122880
        %247 = vst.msk [vmem:[%s179] sm:$0x1] %vm246, %v245
        %v248 = vrot.slane %v186, 7
        %v249 = vrot.slane %v187, 7
        %v250 = vrot.slane %v188, 7
        %v251 = vrot.slane %v189, 7
        %vm256 = vcmask 1040384
        %v257 = vsel %vm256, %v186, %v248
        %v258 = vsel %vm256, %v187, %v249
        %v259 = vsel %vm256, %v188, %v250
        %v260 = vsel %vm256, %v189, %v251
        %v261 = vsub.f32 %v186, %v257
        %v262 = vsub.f32 %v187, %v258
        %v263 = vsub.f32 %v188, %v259
        %v264 = vsub.f32 %v189, %v260
        %v265 = vand.u32 2147483647, %v261
        %v266 = vand.u32 2147483647, %v262
        %v267 = vand.u32 2147483647, %v263
        %v268 = vand.u32 2147483647, %v264
        %v269 = vld [vmem:[#allocation2] sm:$0x1]
        %v270 = vld [vmem:[#allocation2 + $0x1] sm:$0x1]
        %v271 = vld [vmem:[#allocation2 + $0x2] sm:$0x1]
        %v272 = vld [vmem:[#allocation2 + $0x3] sm:$0x1]
        %v273 = vsub.f32 %v186, %v269
        %v274 = vsub.f32 %v187, %v270
        %v275 = vsub.f32 %v188, %v271
        %v276 = vsub.f32 %v189, %v272
        %v277 = vand.u32 2147483647, %v273
        %v278 = vand.u32 2147483647, %v274
        %v279 = vand.u32 2147483647, %v275
        %v280 = vand.u32 2147483647, %v276
        %vm281 = vcmask 130055
        %282 = vst.msk [vmem:[#allocation2 - $0x7] sm:$0x80] %vm281, %v186
        %283 = vst.msk [vmem:[#allocation2 - $0x6] sm:$0x80] %vm281, %v187
        %284 = vst.msk [vmem:[#allocation2 - $0x5] sm:$0x80] %vm281, %v188
        %285 = vst.msk [vmem:[#allocation2 - $0x4] sm:$0x80] %vm281, %v189
        %v286 = vld [vmem:[%s185] sm:$0x1]
        %v287 = vsel %vm231, %v265, 0.0
        %v288 = vsel %vm231, %v266, 0.0
        %v289 = vadd.f32 %v287, %v288
        %v290 = vsel %vm231, %v267, 0.0
        %v291 = vadd.f32 %v289, %v290
        %v292 = vsel %vm231, %v268, 0.0
        %v293 = vadd.f32 %v291, %v292
        %v294 = vrot.slane %v293, 4
        %v295 = vadd.f32 %v293, %v294
        %v296 = vrot.slane %v295, 2
        %v297 = vadd.f32 %v295, %v296
        %v298 = vrot.slane %v297, 1
        %v299 = vadd.f32 %v297, %v298
        %v300 = vsel %vm246, %v277, 0.0
        %v301 = vsel %vm246, %v278, 0.0
        %v302 = vadd.f32 %v300, %v301
        %v303 = vsel %vm246, %v279, 0.0
        %v304 = vadd.f32 %v302, %v303
        %v305 = vsel %vm246, %v280, 0.0
        %v306 = vadd.f32 %v304, %v305
        %v307 = vrot.slane %v306, 4
        %v308 = vadd.f32 %v306, %v307
        %v309 = vrot.slane %v308, 2
        %v310 = vadd.f32 %v308, %v309
        %v311 = vrot.slane %v310, 1
        %v312 = vadd.f32 %v310, %v311
        %v313 = vadd.f32 %v299, %v312
        %v314 = vadd.f32 %v286, %v313
        %315 = vst.msk [vmem:[%s185] sm:$0x1] %vm246, %v314
        %s316 = sand.u32 %s71, 1
        %s317 = scalar_lea.sflag [#allocation5], %s316
        %s318 = sand.u32 %s71, 1
        %s319 = scalar_lea.vmem [#allocation6], %s318
        %s320 = sand.u32 %s97, 1
        %s321 = scalar_lea.sflag [#allocation8], %s320
        %s322 = sand.u32 %s97, 1
        %s323 = scalar_lea.vmem [#allocation7], %s322
        // Predicated region
        $region33: #{tpu_custom_call.1} parent=23 // pred_check
          %p324 = pneg %p81
        $region34: #{tpu_custom_call.1} parent=23 // pred_check_branch
          %326 = sbr.rel (%p324) target = $region36
        $region35: #{tpu_custom_call.1} parent=23 // pred_region
          %s328 = ssub.s32 16, 16
          %329 = vsyncadd %s317, %s328
          %s330 = smul.addr %s27, 16
          %s331 = scalar_lea.hbm %s1, %s330
          %s333 = sshll.u32 %s319, 4
          %s334 = int_to_ptr.vmem [resolvable:$true] %s333
          %336 = dma.vmem_to_hbm [thread:$0]  %s334, 16, %s331, %s317
        $region36: #{tpu_custom_call.1} parent=23 // pred_fallthru
          _
        // Predicated region
        $region37: #{tpu_custom_call.1} parent=23 // pred_check
          %p337 = pneg %p107
        $region38: #{tpu_custom_call.1} parent=23 // pred_check_branch
          %339 = sbr.rel (%p337) target = $region40
        $region39: #{tpu_custom_call.1} parent=23 // pred_region
          %s341 = ssub.s32 16, 16
          %342 = vsyncadd %s321, %s341
          %s343 = smul.addr %s27, 16
          %s344 = scalar_lea.hbm %s2, %s343
          %s346 = sshll.u32 %s323, 4
          %s347 = int_to_ptr.vmem [resolvable:$true] %s346
          %349 = dma.vmem_to_hbm [thread:$0]  %s347, 16, %s344, %s321
        $region40: #{tpu_custom_call.1} parent=23 // pred_fallthru
          _
      $region24: #{tpu_custom_call.1} parent=5 // pred_fallthru
        _
      %p350 = scmp.le.s32.totalorder 2, %s18
      // Predicated region
      $region41: #{tpu_custom_call.1} parent=5 // pred_check
        %p351 = pneg %p350
      $region42: #{tpu_custom_call.1} parent=5 // pred_check_branch
        %353 = sbr.rel (%p351) target = $region44
      $region43: #{tpu_custom_call.1} parent=5 // pred_region
        %s354 = ssub.s32 %s18, 2
        // Predicated region
        $region45: #{tpu_custom_call.1} parent=43 // pred_check
          %p355 = pneg %p87
        $region46: #{tpu_custom_call.1} parent=43 // pred_check_branch
          %357 = sbr.rel (%p355) target = $region48
        $region47: #{tpu_custom_call.1} parent=43 // pred_region
          %s358 = sand.u32 %s72, 1
          %s359 = scalar_lea.sflag [#allocation5], %s358
          %s360 = sand.u32 %s72, 1
          %s361 = scalar_lea.vmem [#allocation6], %s360
          %362 = dma.done %s359, 16
        $region48: #{tpu_custom_call.1} parent=43 // pred_fallthru
          _
        // Predicated region
        $region49: #{tpu_custom_call.1} parent=43 // pred_check
          %p363 = pneg %p113
        $region50: #{tpu_custom_call.1} parent=43 // pred_check_branch
          %365 = sbr.rel (%p363) target = $region52
        $region51: #{tpu_custom_call.1} parent=43 // pred_region
          %s366 = sand.u32 %s98, 1
          %s367 = scalar_lea.sflag [#allocation8], %s366
          %s368 = sand.u32 %s98, 1
          %s369 = scalar_lea.vmem [#allocation7], %s368
          %370 = dma.done %s367, 16
        $region52: #{tpu_custom_call.1} parent=43 // pred_fallthru
          _
      $region44: #{tpu_custom_call.1} parent=5 // pred_fallthru
        _
    $region6: #{tpu_custom_call.1} parent=1 // loop_footer
      %s22 = sadd.s32 1, %s18
    $region7: #{tpu_custom_call.1} parent=1 // loop_footer_branch
      %17 = sbr.rel target = $region3
    $region8: #{tpu_custom_call.1} parent=1 // loop_exit
      _
    %371 = vsyncpa [#allocation4], 1
    %s372 = scalar_lea.sflag [#allocation4], 1
    %373 = vsyncpa %s372, 1
    %374 = vsyncpa [#allocation5], 1
    %s375 = scalar_lea.sflag [#allocation5], 1
    %376 = vsyncpa %s375, 1
    %377 = vsyncpa [#allocation8], 1
    %s378 = scalar_lea.sflag [#allocation8], 1
    %379 = vsyncpa %s378, 1

</llo_original>
